<compile_context>
chip_gen: v6e
topology: v6e:2x2x1
jax: 0.10.0
libtpu: 0.0.40
codegen_flags: <defaults>
</compile_context>

<pallas_src>
import functools

import numpy as np
import jax
import jax.numpy as jnp
from jax import lax
from jax.experimental import pallas as pl
from jax.experimental.pallas import tpu as pltpu

# Scaled-down VGG16 feature config (channels / 16); last 'M' removed as in the module.
CFG = [4, 4, "M", 8, 8, "M", 16, 16, 16, "M", 32, 32, 32, "M", 32, 32, 32]
SAFA_HEADS = 1


# --------------------------------------------------------------------------------------
# pltpu.roll direction probe: the conv/pool kernels need "bring element s+off to lane s".
# --------------------------------------------------------------------------------------

@functools.lru_cache(maxsize=None)
def _roll_dir():
    """Returns d such that pltpu.roll(x, (d*off) % n, axis)[s] == x[(s+off) % n].

    Probed once with a tiny eager kernel (call it once outside jit before tracing)."""
    def k(x_ref, o_ref):
        o_ref[...] = pltpu.roll(x_ref[...], 1, axis=1)

    with jax.ensure_compile_time_eval():
        x = lax.broadcasted_iota(jnp.float32, (8, 128), 1)
        y = pl.pallas_call(k, out_shape=jax.ShapeDtypeStruct((8, 128), jnp.float32))(x)
        nproll = bool(float(y[0, 1]) == 0.0)  # np.roll semantics: out[i] = in[i - shift]
    return -1 if nproll else 1


def _shift_amount(off, size):
    """Roll amount that brings element (s + off) to position s on an axis of length size."""
    return (_roll_dir() * off) % size


def _pad_lanes(x):
    """Pad the flattened-spatial (lane) dim up to a multiple of 128 (lane-dense, roll-safe)."""
    s = x.shape[-1]
    sp = max(128, ((s + 127) // 128) * 128)
    if sp != s:
        x = jnp.pad(x, ((0, 0), (0, 0), (0, sp - s)))
    return x


# --------------------------------------------------------------------------------------
# Fused 3x3 conv (+ bias + ReLU [+ 2x2 pairwise max]) kernel, channel-major flat layout.
# --------------------------------------------------------------------------------------

def _conv3x3_kernel(x_ref, w_ref, b_ref, o_ref, *, H, W, Sp, shifts, pool_shifts):
    S = H * W
    x = x_ref[0, :, :]                                     # (Cin, Sp) bf16
    lane = lax.broadcasted_iota(jnp.int32, (1, Sp), 1)     # flat spatial index s
    col = jnp.bitwise_and(lane, W - 1)                     # w = s % W  (W is a power of two)

    taps = [(dy, dx) for dy in (-1, 0, 1) for dx in (-1, 0, 1)]
    acc = None
    for t, (dy, dx) in enumerate(taps):
        xt = pltpu.roll(x, shifts[t], axis=1) if shifts[t] else x
        part = jnp.dot(w_ref[t, :, :], xt,
                       preferred_element_type=jnp.float32)           # (Cout, Sp) f32
        conds = []
        if dy == -1:
            conds.append(lane >= W)                                   # h-1 >= 0
        if dy == 1:
            conds.append(lane < (H - 1) * W)                          # h+1 <  H
        if dx == -1:
            conds.append(col >= 1)                                    # w-1 >= 0
        if dx == 1:
            conds.append(col < (W - 1))                               # w+1 <  W
        if conds:
            ok = conds[0]
            for c in conds[1:]:
                ok = jnp.logical_and(ok, c)
            part = jnp.where(ok, part, 0.0)                           # zero padding
        acc = part if acc is None else acc + part

    acc = acc + b_ref[...]                                            # (Cout, 1) bias
    y = jnp.maximum(acc, 0.0).astype(o_ref.dtype)                     # ReLU -> bf16

    if pool_shifts is not None:
        # 2x2 MaxPool, pairwise-max part: the pooled value for window (2h, 2w) lands at
        # lane 2h*W + 2w; the stride-2 subsampling is pure indexing, done by XLA outside.
        sw, sh = pool_shifts
        y = jnp.maximum(y, pltpu.roll(y, sw, axis=1))                 # max(y[s], y[s+1])
        y = jnp.maximum(y, pltpu.roll(y, sh, axis=1))                 # ... and next row

    if Sp != S:
        y = jnp.where(lane < S, y, jnp.zeros_like(y))                 # keep lane pad zero
    o_ref[0, :, :] = y


def conv3x3_relu(x, w, b, H, W, fuse_pool):
    """x: (B, Cin, Sp) bf16 flat activations; w: (3,3,Cin,Cout) f32; b: (Cout,) f32."""
    B, Cin, Sp = x.shape
    S = H * W
    assert S <= Sp and (W & (W - 1)) == 0, (H, W, Sp)
    Cout = w.shape[-1]
    wt = jnp.transpose(w, (0, 1, 3, 2)).reshape(9, Cout, Cin).astype(jnp.bfloat16)
    bt = b.reshape(Cout, 1).astype(jnp.float32)
    shifts = tuple(_shift_amount(dy * W + dx, Sp)
                   for dy in (-1, 0, 1) for dx in (-1, 0, 1))
    pool_shifts = (_shift_amount(1, Sp), _shift_amount(W, Sp)) if fuse_pool else None
    kernel = functools.partial(_conv3x3_kernel, H=H, W=W, Sp=Sp,
                               shifts=shifts, pool_shifts=pool_shifts)
    return pl.pallas_call(
        kernel,
        out_shape=jax.ShapeDtypeStruct((B, Cout, Sp), jnp.bfloat16),
        grid=(B,),
        in_specs=[pl.BlockSpec((1, Cin, Sp), lambda i: (i, 0, 0)),
                  pl.BlockSpec((9, Cout, Cin), lambda i: (0, 0, 0)),
                  pl.BlockSpec((Cout, 1), lambda i: (0, 0))],
        out_specs=pl.BlockSpec((1, Cout, Sp), lambda i: (i, 0, 0)),
        compiler_params=pltpu.CompilerParams(dimension_semantics=("parallel",)),
    )(x, wt, bt)


def _pool_subsample(y, H, W):
    """Stride-2 subsample of the pair-maxed conv output (pure indexing -> XLA)."""
    B, C, _ = y.shape
    y = y[:, :, : H * W].reshape(B, C, H, W)[:, :, ::2, ::2]
    Ho, Wo = H // 2, W // 2
    return _pad_lanes(y.reshape(B, C, Ho * Wo)), Ho, Wo


# --------------------------------------------------------------------------------------
# SAFA head kernel: channel-max, per-head SA matmuls + tanh, attention pooling, L2 norm.
# --------------------------------------------------------------------------------------

def _safa_kernel(x_ref, w1_ref, b1_ref, w2_ref, b2_ref, o_ref, *, num):
    xf = x_ref[0, :, :].astype(jnp.float32)                 # (C, S)
    maskv = jnp.max(xf, axis=0, keepdims=True)              # (1, S)  == torch x.max(1)
    gs = []
    sumsq = jnp.zeros((1, 1), jnp.float32)
    for d in range(num):
        m1 = jnp.dot(maskv, w1_ref[d, :, :],
                     preferred_element_type=jnp.float32) + b1_ref[d, :, :]   # (1, hid)
        m2 = jnp.dot(m1, w2_ref[d, :, :],
                     preferred_element_type=jnp.float32) + b2_ref[d, :, :]   # (1, S)
        sa = jnp.tanh(m2)                                                     # (1, S)
        g = jnp.sum(xf * sa, axis=1, keepdims=True)                           # (C, 1)
        gs.append(g)
        sumsq = sumsq + jnp.sum(g * g, axis=0, keepdims=True)                 # (1, 1)
    # F.normalize(p=2, dim=1) over the flattened (C*num) features, eps=1e-12.
    inv = lax.rsqrt(jnp.maximum(sumsq, 1e-24))
    for d in range(num):
        o_ref[0, d, :, :] = gs[d] * inv


def safa_head(feat, params):
    """feat: (B, C, S) bf16 backbone features (== sat_x.view(B, C, -1))."""
    B, C, S = feat.shape
    num = params["sa_w1"].shape[-1]
    hid = params["sa_w1"].shape[1]
    w1t = jnp.transpose(params["sa_w1"], (2, 0, 1))   # (num, S, hid)
    b1t = jnp.transpose(params["sa_b1"], (2, 0, 1))   # (num, 1, hid)
    w2t = jnp.transpose(params["sa_w2"], (2, 0, 1))   # (num, hid, S)
    b2t = jnp.transpose(params["sa_b2"], (2, 0, 1))   # (num, 1, S)
    g = pl.pallas_call(
        functools.partial(_safa_kernel, num=num),
        out_shape=jax.ShapeDtypeStruct((B, num, C, 1), jnp.float32),
        grid=(B,),
        in_specs=[pl.BlockSpec((1, C, S), lambda i: (i, 0, 0)),
                  pl.BlockSpec((num, S, hid), lambda i: (0, 0, 0)),
                  pl.BlockSpec((num, 1, hid), lambda i: (0, 0, 0)),
                  pl.BlockSpec((num, hid, S), lambda i: (0, 0, 0)),
                  pl.BlockSpec((num, 1, S), lambda i: (0, 0, 0))],
        out_specs=pl.BlockSpec((1, num, C, 1), lambda i: (i, 0, 0, 0)),
        compiler_params=pltpu.CompilerParams(dimension_semantics=("parallel",)),
    )(feat, w1t, b1t, w2t, b2t)
    # torch: matmul(sat_x, sat_sa) -> (B, C, num) -> .view(B, C*num); L2 norm done in-kernel.
    return jnp.transpose(g[..., 0], (0, 2, 1)).reshape(B, C * num)


# --------------------------------------------------------------------------------------
# Full forward pass (PyTorch-facing NCHW input), params init, pure-JAX reference.
# --------------------------------------------------------------------------------------

def safa_vgg_sat_forward(sat_nchw, params):
    B, Cin, H, W = sat_nchw.shape
    x = _pad_lanes(sat_nchw.astype(jnp.bfloat16).reshape(B, Cin, H * W))
    ci = 0
    for idx, v in enumerate(CFG):
        if v == "M":
            continue  # the 2x2 max is fused into the preceding conv's epilogue
        fuse_pool = idx + 1 < len(CFG) and CFG[idx + 1] == "M"
        x = conv3x3_relu(x, params["conv_w"][ci], params["conv_b"][ci], H, W, fuse_pool)
        # TODO(synk): Dropout(p=0.2) after the late convs is identity in eval mode;
        # train-mode stochastic dropout is not implemented.
        if fuse_pool:
            x, H, W = _pool_subsample(x, H, W)
        ci += 1
    feat = x[:, :, : H * W]                      # (B, C, S)  == sat_x.view(B, C, -1)
    return safa_head(feat, params)


def init_params(key, in_dim, num_heads=SAFA_HEADS):
    params = {"conv_w": [], "conv_b": []}
    cin = 3
    for v in CFG:
        if v == "M":
            continue
        key, kw = jax.random.split(key)
        w = jax.random.normal(kw, (3, 3, cin, v), jnp.float32) * jnp.sqrt(2.0 / (9 * cin))
        params["conv_w"].append(w)
        params["conv_b"].append(jnp.zeros((v,), jnp.float32))
        cin = v
    hid = in_dim // 2
    key, k1, k2 = jax.random.split(key, 3)
    params["sa_w1"] = jax.random.normal(k1, (in_dim, hid, num_heads), jnp.float32) * 0.005
    params["sa_b1"] = jnp.full((1, hid, num_heads), 0.1, jnp.float32)
    params["sa_w2"] = jax.random.normal(k2, (hid, in_dim, num_heads), jnp.float32) * 0.005
    params["sa_b2"] = jnp.full((1, in_dim, num_heads), 0.1, jnp.float32)
    return params


def reference_forward(sat, params):
    """Pure-JAX reference with the same precision policy (bf16 storage, f32 accumulate)."""
    x = sat.astype(jnp.bfloat16)
    ci = 0
    for v in CFG:
        if v == "M":
            B_, C_, Hh, Ww = x.shape
            x = jnp.max(x.reshape(B_, C_, Hh // 2, 2, Ww // 2, 2), axis=(3, 5))
        else:
            w = params["conv_w"][ci].astype(jnp.bfloat16)
            b = params["conv_b"][ci]
            y = lax.conv_general_dilated(
                x, w, window_strides=(1, 1), padding="SAME",
                dimension_numbers=("NCHW", "HWIO", "NCHW"),
                preferred_element_type=jnp.float32)
            x = jnp.maximum(y + b.reshape(1, -1, 1, 1), 0.0).astype(jnp.bfloat16)
            ci += 1
    B_, C_, Hf, Wf = x.shape
    xs = x.reshape(B_, C_, Hf * Wf).astype(jnp.float32)
    maskv = jnp.max(xs, axis=1)
    m1 = jnp.einsum("bi,ijd->bjd", maskv, params["sa_w1"]) + params["sa_b1"]
    m2 = jnp.einsum("bjd,jid->bid", m1, params["sa_w2"]) + params["sa_b2"]
    sa = jnp.tanh(m2)
    g = jnp.einsum("bcs,bsd->bcd", xs, sa).reshape(B_, -1)
    nrm = jnp.maximum(jnp.sqrt(jnp.sum(g * g, axis=1, keepdims=True)), 1e-12)
    return g / nrm


if __name__ == "__main__":
    key = jax.random.PRNGKey(0)
    k_in, k_par = jax.random.split(key)

    B, H, W = 2, 64, 64                       # 4 max-pools -> 4x4 feature map -> S = 16
    S = (H // 16) * (W // 16)                 # SA in_dim (400 in the original, 16 here)
    C_out = CFG[-1]                           # 512 in the original, 32 here
    num_features = SAFA_HEADS * C_out

    sat = jax.random.normal(k_in, (B, 3, H, W), dtype=jnp.float32)   # NCHW like PyTorch
    params = init_params(k_par, in_dim=S, num_heads=SAFA_HEADS)

    _ = _roll_dir()                           # prime the roll-direction probe outside jit

    fwd = jax.jit(safa_vgg_sat_forward)
    out = jax.block_until_ready(fwd(sat, params))

    assert out.shape == (B, num_features), out.shape
    assert bool(jnp.all(jnp.isfinite(out)))

    # Correctness check against a pure-JAX reference using the same precision policy.
    ref = jax.block_until_ready(jax.jit(reference_forward)(sat, params))
    np.testing.assert_allclose(np.asarray(out), np.asarray(ref), atol=3e-2, rtol=3e-2)

    print("KERNEL_OK")
</pallas_src>

<mosaic_0001>
module attributes {stable_mosaic.version = 11 : i64} {
  func.func @k(%arg0: memref<8x128xf32, #tpu.memory_space<vmem>>, %arg1: memref<8x128xf32, #tpu.memory_space<vmem>>) attributes {dimension_semantics = [], scalar_prefetch = 0 : i64, scratch_operands = 0 : i64, tpu.core_type = #tpu.core_type<tc>} {
    %c0 = arith.constant 0 : index
    %c0_0 = arith.constant 0 : index
    %0 = vector.load %arg0[%c0, %c0_0] : memref<8x128xf32, #tpu.memory_space<vmem>>, vector<8x128xf32>
    %c1_i32 = arith.constant 1 : i32
    %1 = tpu.dynamic_rotate %0 by %c1_i32 dim 1 : vector<8x128xf32>, i32 -> vector<8x128xf32>
    %c0_1 = arith.constant 0 : index
    %c0_2 = arith.constant 0 : index
    %2 = vector.load %arg1[%c0_1, %c0_2] : memref<8x128xf32, #tpu.memory_space<vmem>>, vector<8x128xf32>
    tpu.vector_store %arg1[%c0_1, %c0_2], %1 {strides = array<i32>} : memref<8x128xf32, #tpu.memory_space<vmem>>, vector<8x128xf32>,
    return
  }
}

</mosaic_0001>

<llo_original>
// kernel: tpu_custom_call.1
$region0: #{tpu_custom_call.1}
  #allocation0 [shape = 'u32[]', space=smem, size = 0x4, offset = 0x4, fixed_abs, tag = 'smem constant byte address 0x4 - core index']
  #allocation1 [shape = 'u32[144,128]{1,0:T(1,128)}', space=vmem, size = 0x12000, scoped, tag = 'internal scratch']
  %s0 = inlined_call_operand.hbm [shape: f32[8,128], index: 0, kind: input, shape index: {}]
  %s1 = inlined_call_operand.hbm [shape: f32[8,128], index: 1, kind: output, shape index: {}]
  %s2 = sld [smem:[#allocation0]]
  $region18: #{tpu_custom_call.1} parent=0
    _
  %s4 = ssub.s32 1, %s2
  %s5 = scalar_select 0, %s4, %s2
  $region1: #{tpu_custom_call.1} parent=0
    #allocation2 [shape = 'u8[4096]{0}', space=vmem, size = 0x1000, scoped, tag = 'input window, operand 0, single buffered']
    #allocation3 [shape = 's32[1]{0}', space=sflag, size = 0x4, scoped, tag = 'scoped memory for tpu_custom_call.1']
    #allocation4 [shape = 's32[1]{0}', space=sflag, size = 0x4, scoped, tag = 'scoped memory for tpu_custom_call.1']
    #allocation5 [shape = 'u8[4096]{0}', space=vmem, size = 0x1000, scoped, tag = 'output window, operand 0, single buffered']
    %6 = vsyncpa [#allocation3], 0
    %7 = vsyncpa [#allocation4], 0
    // Predicated region
    $region2: #{tpu_custom_call.1} parent=1 // pred_check
      _
    $region3: #{tpu_custom_call.1} parent=1 // pred_check_branch
      %9 = sbr.rel (0) target = $region5
    $region4: #{tpu_custom_call.1} parent=1 // pred_region
      %s11 = ssub.s32 128, 128
      %12 = vsyncadd [#allocation3], %s11
      %s14 = sshll.u32 [#allocation2], 4
      %s15 = int_to_ptr.vmem [resolvable:$true] %s14
      %17 = dma.hbm_to_vmem [thread:$0]  %s0, 128, %s15, [#allocation3]
    $region5: #{tpu_custom_call.1} parent=1 // pred_fallthru
      _
    // Predicated region
    $region6: #{tpu_custom_call.1} parent=1 // pred_check
      _
    $region7: #{tpu_custom_call.1} parent=1 // pred_check_branch
      %19 = sbr.rel (0) target = $region9
    $region8: #{tpu_custom_call.1} parent=1 // pred_region
      %20 = dma.done [#allocation3], 128
    $region9: #{tpu_custom_call.1} parent=1 // pred_fallthru
      _
    %v21 = vld [vmem:[#allocation2] sm:$0xff]
    %22 = vrot.lane.b32.xlu0 %v21, 1
    %v23 = vpop.permute.xlu0 %22
    %24 = vst [vmem:[#allocation5] sm:$0xff] %v23
    // Predicated region
    $region10: #{tpu_custom_call.1} parent=1 // pred_check
      _
    $region11: #{tpu_custom_call.1} parent=1 // pred_check_branch
      %26 = sbr.rel (0) target = $region13
    $region12: #{tpu_custom_call.1} parent=1 // pred_region
      %s28 = ssub.s32 128, 128
      %29 = vsyncadd [#allocation4], %s28
      %s31 = sshll.u32 [#allocation5], 4
      %s32 = int_to_ptr.vmem [resolvable:$true] %s31
      %34 = dma.vmem_to_hbm [thread:$0]  %s32, 128, %s1, [#allocation4]
    $region13: #{tpu_custom_call.1} parent=1 // pred_fallthru
      _
    // Predicated region
    $region14: #{tpu_custom_call.1} parent=1 // pred_check
      _
    $region15: #{tpu_custom_call.1} parent=1 // pred_check_branch
      %36 = sbr.rel (0) target = $region17
    $region16: #{tpu_custom_call.1} parent=1 // pred_region
      %37 = dma.done [#allocation4], 128
    $region17: #{tpu_custom_call.1} parent=1 // pred_fallthru
      _
    %38 = vsyncpa [#allocation3], 1
    %39 = vsyncpa [#allocation4], 1

</llo_original>
